<compile_context>
chip_gen: v7x
topology: tpu7x:2x2x1
jax: 0.10.0
libtpu: 0.0.40
codegen_flags: <defaults>
</compile_context>

<pallas_src>
import functools

import jax
import jax.numpy as jnp
from jax import lax
from jax.experimental import pallas as pl
from jax.experimental.pallas import tpu as pltpu


def _resblock_kernel(x_ref, w_ref, b_ref, o_ref, *, W):
    # x_ref : (1, NC, HW)   Nb images packed on sublanes (row = n*C + c), lanes = spatial
    # w_ref : (2, NC, 9*NC) per-conv stacked weights; column block t*NC:(t+1)*NC is the
    #                       batch-block-diagonal weight of kernel tap t = kh*3 + kw
    # b_ref : (2, NC, 1)    per-conv biases (broadcast over the lane / spatial axis)
    # o_ref : (1, NC, HW)
    NC, HW = x_ref.shape[1], x_ref.shape[2]

    x = x_ref[0].astype(jnp.float32)                      # (NC, HW)

    # Reflect-boundary masks (lane position only; shared by both convs).
    col = lax.broadcasted_iota(jnp.int32, (NC, HW), 1)
    w_pos = col % W
    is_w_first = w_pos == 0
    is_w_last = w_pos == W - 1
    is_h_first = col < W
    is_h_last = col >= HW - W

    def lane_roll(a, shift):
        # XLU lane rotate with jnp.roll semantics: out[i] = in[(i - shift) % HW].
        return pltpu.roll(a, shift % HW, axis=1)

    def tap_slab(src):
        # im2col slab (9*NC, HW): rows [t*NC:(t+1)*NC] hold the value at
        # (h + kh - 1, w + kw - 1), t = kh*3 + kw, with reflection at the borders.
        left = lane_roll(src, 1)                          # value at w-1
        right = lane_roll(src, -1)                        # value at w+1
        w_taps = (jnp.where(is_w_first, right, left), src,
                  jnp.where(is_w_last, left, right))
        cols = []
        for kw in range(3):
            a = w_taps[kw]
            up = lane_roll(a, W)                          # value at h-1
            down = lane_roll(a, -W)                       # value at h+1
            cols.append((jnp.where(is_h_first, down, up), a,
                         jnp.where(is_h_last, up, down)))
        return jnp.concatenate(
            [cols[kw][kh] for kh in range(3) for kw in range(3)], axis=0)

    def conv3x3(src, j):
        # One MXU dot per conv: (NC, 9*NC) x (9*NC, HW), f32 accumulation.
        return jnp.dot(w_ref[j], tap_slab(src),
                       preferred_element_type=jnp.float32) + b_ref[j]

    out1 = jnp.maximum(conv3x3(x, 0), 0.0)                # conv1 + ReLU
    out2 = conv3x3(out1, 1) + x                           # conv2 + residual
    o_ref[0] = jnp.maximum(out2, 0.0).astype(o_ref.dtype)  # final ReLU, lane-dense store


def residual_block(x_nchw, w1, b1, w2, b2):
    """x_nchw: (N, C, H, W); w*: (C, C, 3, 3) PyTorch OIHW layout; b*: (C,)."""
    N, C, H, W = x_nchw.shape
    assert H >= 2 and W >= 2, "reflect padding of 1 requires H, W >= 2"
    HW = H * W

    # Pack Nb consecutive images onto sublanes so Nb*C >= 8 (one full f32 vreg).
    target_nb = max(1, -(-8 // C))
    nb = next((d for d in range(1, N + 1) if N % d == 0 and d >= target_nb), N)
    ng = N // nb
    NC = nb * C

    x_packed = x_nchw.reshape(ng, NC, HW)                 # free: N, C adjacent in NCHW

    eye = jnp.eye(nb, dtype=jnp.float32)

    def pack_w(w):
        # OIHW (C,C,3,3) -> (NC, 9*NC): column block t = kh*3 + kw holds the
        # batch-block-diagonal copy of w[:, :, kh, kw].
        taps = jnp.transpose(w, (2, 3, 0, 1)).reshape(9, C, C).astype(jnp.float32)
        bd = jnp.einsum("nm,tij->tnimj", eye, taps).reshape(9, NC, NC)
        return jnp.transpose(bd, (1, 0, 2)).reshape(NC, 9 * NC)

    def pack_b(b):
        return jnp.tile(b.astype(jnp.float32), nb).reshape(NC, 1)

    w_all = jnp.stack([pack_w(w1), pack_w(w2)])           # (2, NC, 9*NC)
    b_all = jnp.stack([pack_b(b1), pack_b(b2)])           # (2, NC, 1)

    kernel = functools.partial(_resblock_kernel, W=W)

    out_packed = pl.pallas_call(
        kernel,
        out_shape=jax.ShapeDtypeStruct((ng, NC, HW), x_nchw.dtype),
        grid_spec=pltpu.PrefetchScalarGridSpec(
            num_scalar_prefetch=0,
            grid=(ng,),                                   # Nb images per grid step
            in_specs=[
                pl.BlockSpec((1, NC, HW), lambda g: (g, 0, 0)),
                pl.BlockSpec((2, NC, 9 * NC), lambda g: (0, 0, 0)),
                pl.BlockSpec((2, NC, 1), lambda g: (0, 0, 0)),
            ],
            out_specs=pl.BlockSpec((1, NC, HW), lambda g: (g, 0, 0)),
        ),
        compiler_params=pltpu.CompilerParams(
            dimension_semantics=("parallel",)),
    )(x_packed, w_all, b_all)

    return out_packed.reshape(N, C, H, W)


def _reference(x_nchw, w1, b1, w2, b2):
    """Pure-JAX reference matching PyTorch semantics (NCHW, reflect pad)."""
    def conv(x, w, b):
        xp = jnp.pad(x, ((0, 0), (0, 0), (1, 1), (1, 1)), mode="reflect")
        y = lax.conv_general_dilated(
            xp, w, window_strides=(1, 1), padding="VALID",
            dimension_numbers=("NCHW", "OIHW", "NCHW"))
        return y + b.reshape(1, -1, 1, 1)

    out = jax.nn.relu(conv(x_nchw, w1, b1))
    out = conv(out, w2, b2) + x_nchw
    return jax.nn.relu(out)


if __name__ == "__main__":
    N, C, H, W = 2, 4, 16, 16
    key = jax.random.PRNGKey(0)
    kx, kw1, kb1, kw2, kb2 = jax.random.split(key, 5)

    # Deterministic synthetic parameters (PyTorch-style shapes, uniform fan-in scale).
    fan_in = C * 3 * 3
    bound = 1.0 / (fan_in ** 0.5)
    x = jax.random.normal(kx, (N, C, H, W), dtype=jnp.float32)
    w1 = jax.random.uniform(kw1, (C, C, 3, 3), jnp.float32, -bound, bound)
    b1 = jax.random.uniform(kb1, (C,), jnp.float32, -bound, bound)
    w2 = jax.random.uniform(kw2, (C, C, 3, 3), jnp.float32, -bound, bound)
    b2 = jax.random.uniform(kb2, (C,), jnp.float32, -bound, bound)

    out = jax.block_until_ready(residual_block(x, w1, b1, w2, b2))
    ref = jax.block_until_ready(_reference(x, w1, b1, w2, b2))

    assert out.shape == (N, C, H, W)
    assert jnp.allclose(out, ref, atol=1e-5, rtol=1e-5), float(jnp.max(jnp.abs(out - ref)))

    print("KERNEL_OK")
</pallas_src>

<mosaic_0001>
module attributes {stable_mosaic.version = 11 : i64} {
  func.func @_resblock_kernel(%arg0: i32, %arg1: memref<1x8x256xf32, #tpu.memory_space<vmem>>, %arg2: memref<2x8x72xf32, #tpu.memory_space<vmem>>, %arg3: memref<2x8x1xf32, #tpu.memory_space<vmem>>, %arg4: memref<1x8x256xf32, #tpu.memory_space<vmem>>) attributes {dimension_semantics = [#tpu.dimension_semantics<parallel>], iteration_bounds = array<i64: 1>, scalar_prefetch = 0 : i64, scratch_operands = 0 : i64, tpu.core_type = #tpu.core_type<tc>, window_params = [{transform_indices = @transform_0, window_bounds = array<i64: 1, 8, 256>}, {pipeline_mode = #tpu.pipeline_mode<synchronous>, transform_indices = @transform_1, window_bounds = array<i64: 2, 8, 72>}, {pipeline_mode = #tpu.pipeline_mode<synchronous>, transform_indices = @transform_2, window_bounds = array<i64: 2, 8, 1>}, {transform_indices = @transform_3, window_bounds = array<i64: 1, 8, 256>}]} {
    %c0 = arith.constant 0 : index
    %c0_0 = arith.constant 0 : index
    %c0_1 = arith.constant 0 : index
    %0 = vector.load %arg1[%c0, %c0_0, %c0_1] : memref<1x8x256xf32, #tpu.memory_space<vmem>>, vector<1x8x256xf32>
    %1 = vector.shape_cast %0 : vector<1x8x256xf32> to vector<8x256xf32>
    %2 = tpu.iota {dimensions = array<i32: 1>} : vector<8x256xi32>
    %c16_i32 = arith.constant 16 : i32
    %c0_i32 = arith.constant 0 : i32
    %3 = arith.cmpi eq, %c16_i32, %c0_i32 : i32
    %c1_i32 = arith.constant 1 : i32
    %4 = arith.select %3, %c1_i32, %c16_i32 : i32
    %5 = vector.broadcast %4 : i32 to vector<8x256xi32>
    %6 = arith.remsi %2, %5 : vector<8x256xi32>
    %c0_i32_2 = arith.constant 0 : i32
    %7 = vector.broadcast %c0_i32_2 : i32 to vector<8x256xi32>
    %8 = arith.cmpi ne, %6, %7 : vector<8x256xi32>
    %c0_i32_3 = arith.constant 0 : i32
    %9 = vector.broadcast %c0_i32_3 : i32 to vector<8x256xi32>
    %10 = arith.cmpi slt, %6, %9 : vector<8x256xi32>
    %c0_i32_4 = arith.constant 0 : i32
    %11 = arith.cmpi slt, %4, %c0_i32_4 : i32
    %12 = vector.broadcast %11 : i1 to vector<8x256xi1>
    %13 = vector.broadcast %12 : vector<8x256xi1> to vector<8x256xi1>
    %14 = arith.xori %10, %13 : vector<8x256xi1>
    %15 = arith.andi %14, %8 : vector<8x256xi1>
    %16 = vector.broadcast %4 : i32 to vector<8x256xi32>
    %17 = arith.addi %6, %16 : vector<8x256xi32>
    %18 = arith.select %15, %17, %6 : vector<8x256xi1>, vector<8x256xi32>
    %c0_i32_5 = arith.constant 0 : i32
    %19 = vector.broadcast %c0_i32_5 : i32 to vector<8x256xi32>
    %20 = arith.cmpi eq, %18, %19 : vector<8x256xi32>
    %c15_i32 = arith.constant 15 : i32
    %21 = vector.broadcast %c15_i32 : i32 to vector<8x256xi32>
    %22 = arith.cmpi eq, %18, %21 : vector<8x256xi32>
    %c16_i32_6 = arith.constant 16 : i32
    %23 = vector.broadcast %c16_i32_6 : i32 to vector<8x256xi32>
    %24 = arith.cmpi slt, %2, %23 : vector<8x256xi32>
    %c240_i32 = arith.constant 240 : i32
    %25 = vector.broadcast %c240_i32 : i32 to vector<8x256xi32>
    %26 = arith.cmpi sge, %2, %25 : vector<8x256xi32>
    %c0_7 = arith.constant 0 : index
    %c0_8 = arith.constant 0 : index
    %c0_9 = arith.constant 0 : index
    %27 = vector.load %arg2[%c0_7, %c0_8, %c0_9] : memref<2x8x72xf32, #tpu.memory_space<vmem>>, vector<1x8x72xf32>
    %28 = vector.shape_cast %27 : vector<1x8x72xf32> to vector<8x72xf32>
    %c1_i32_10 = arith.constant 1 : i32
    %29 = tpu.dynamic_rotate %1 by %c1_i32_10 dim 1 : vector<8x256xf32>, i32 -> vector<8x256xf32>
    %c255_i32 = arith.constant 255 : i32
    %30 = tpu.dynamic_rotate %1 by %c255_i32 dim 1 : vector<8x256xf32>, i32 -> vector<8x256xf32>
    %31 = arith.select %20, %30, %29 : vector<8x256xi1>, vector<8x256xf32>
    %32 = arith.select %22, %29, %30 : vector<8x256xi1>, vector<8x256xf32>
    %c16_i32_11 = arith.constant 16 : i32
    %33 = tpu.dynamic_rotate %31 by %c16_i32_11 dim 1 : vector<8x256xf32>, i32 -> vector<8x256xf32>
    %c240_i32_12 = arith.constant 240 : i32
    %34 = tpu.dynamic_rotate %31 by %c240_i32_12 dim 1 : vector<8x256xf32>, i32 -> vector<8x256xf32>
    %35 = arith.select %24, %34, %33 : vector<8x256xi1>, vector<8x256xf32>
    %36 = arith.select %26, %33, %34 : vector<8x256xi1>, vector<8x256xf32>
    %c16_i32_13 = arith.constant 16 : i32
    %37 = tpu.dynamic_rotate %1 by %c16_i32_13 dim 1 : vector<8x256xf32>, i32 -> vector<8x256xf32>
    %c240_i32_14 = arith.constant 240 : i32
    %38 = tpu.dynamic_rotate %1 by %c240_i32_14 dim 1 : vector<8x256xf32>, i32 -> vector<8x256xf32>
    %39 = arith.select %24, %38, %37 : vector<8x256xi1>, vector<8x256xf32>
    %40 = arith.select %26, %37, %38 : vector<8x256xi1>, vector<8x256xf32>
    %c16_i32_15 = arith.constant 16 : i32
    %41 = tpu.dynamic_rotate %32 by %c16_i32_15 dim 1 : vector<8x256xf32>, i32 -> vector<8x256xf32>
    %c240_i32_16 = arith.constant 240 : i32
    %42 = tpu.dynamic_rotate %32 by %c240_i32_16 dim 1 : vector<8x256xf32>, i32 -> vector<8x256xf32>
    %43 = arith.select %24, %42, %41 : vector<8x256xi1>, vector<8x256xf32>
    %44 = arith.select %26, %41, %42 : vector<8x256xi1>, vector<8x256xf32>
    %45 = tpu.concatenate %35, %39, %43, %31, %1, %32, %36, %40, %44 in 0 : vector<8x256xf32>, vector<8x256xf32>, vector<8x256xf32>, vector<8x256xf32>, vector<8x256xf32>, vector<8x256xf32>, vector<8x256xf32>, vector<8x256xf32>, vector<8x256xf32> -> vector<72x256xf32>
    %cst = arith.constant dense<0.000000e+00> : vector<8x256xf32>
    %46 = tpu.matmul %28, %45, %cst {dimension_numbers = #tpu.dot_dimension_numbers<[1], [0], [0], [1], [0, 0, 1, 1], [], []>} : vector<8x72xf32>, vector<72x256xf32>, vector<8x256xf32> -> vector<8x256xf32>
    %c0_17 = arith.constant 0 : index
    %c0_18 = arith.constant 0 : index
    %c0_19 = arith.constant 0 : index
    %47 = vector.load %arg3[%c0_17, %c0_18, %c0_19] : memref<2x8x1xf32, #tpu.memory_space<vmem>>, vector<1x8x1xf32>
    %48 = vector.shape_cast %47 : vector<1x8x1xf32> to vector<8x1xf32>
    %49 = vector.broadcast %48 : vector<8x1xf32> to vector<8x256xf32>
    %50 = arith.addf %46, %49 : vector<8x256xf32>
    %cst_20 = arith.constant 0.000000e+00 : f32
    %51 = vector.broadcast %cst_20 : f32 to vector<8x256xf32>
    %52 = arith.maximumf %50, %51 : vector<8x256xf32>
    %c1 = arith.constant 1 : index
    %c0_21 = arith.constant 0 : index
    %c0_22 = arith.constant 0 : index
    %53 = vector.load %arg2[%c1, %c0_21, %c0_22] : memref<2x8x72xf32, #tpu.memory_space<vmem>>, vector<1x8x72xf32>
    %54 = vector.shape_cast %53 : vector<1x8x72xf32> to vector<8x72xf32>
    %c1_i32_23 = arith.constant 1 : i32
    %55 = tpu.dynamic_rotate %52 by %c1_i32_23 dim 1 : vector<8x256xf32>, i32 -> vector<8x256xf32>
    %c255_i32_24 = arith.constant 255 : i32
    %56 = tpu.dynamic_rotate %52 by %c255_i32_24 dim 1 : vector<8x256xf32>, i32 -> vector<8x256xf32>
    %57 = arith.select %20, %56, %55 : vector<8x256xi1>, vector<8x256xf32>
    %58 = arith.select %22, %55, %56 : vector<8x256xi1>, vector<8x256xf32>
    %c16_i32_25 = arith.constant 16 : i32
    %59 = tpu.dynamic_rotate %57 by %c16_i32_25 dim 1 : vector<8x256xf32>, i32 -> vector<8x256xf32>
    %c240_i32_26 = arith.constant 240 : i32
    %60 = tpu.dynamic_rotate %57 by %c240_i32_26 dim 1 : vector<8x256xf32>, i32 -> vector<8x256xf32>
    %61 = arith.select %24, %60, %59 : vector<8x256xi1>, vector<8x256xf32>
    %62 = arith.select %26, %59, %60 : vector<8x256xi1>, vector<8x256xf32>
    %c16_i32_27 = arith.constant 16 : i32
    %63 = tpu.dynamic_rotate %52 by %c16_i32_27 dim 1 : vector<8x256xf32>, i32 -> vector<8x256xf32>
    %c240_i32_28 = arith.constant 240 : i32
    %64 = tpu.dynamic_rotate %52 by %c240_i32_28 dim 1 : vector<8x256xf32>, i32 -> vector<8x256xf32>
    %65 = arith.select %24, %64, %63 : vector<8x256xi1>, vector<8x256xf32>
    %66 = arith.select %26, %63, %64 : vector<8x256xi1>, vector<8x256xf32>
    %c16_i32_29 = arith.constant 16 : i32
    %67 = tpu.dynamic_rotate %58 by %c16_i32_29 dim 1 : vector<8x256xf32>, i32 -> vector<8x256xf32>
    %c240_i32_30 = arith.constant 240 : i32
    %68 = tpu.dynamic_rotate %58 by %c240_i32_30 dim 1 : vector<8x256xf32>, i32 -> vector<8x256xf32>
    %69 = arith.select %24, %68, %67 : vector<8x256xi1>, vector<8x256xf32>
    %70 = arith.select %26, %67, %68 : vector<8x256xi1>, vector<8x256xf32>
    %71 = tpu.concatenate %61, %65, %69, %57, %52, %58, %62, %66, %70 in 0 : vector<8x256xf32>, vector<8x256xf32>, vector<8x256xf32>, vector<8x256xf32>, vector<8x256xf32>, vector<8x256xf32>, vector<8x256xf32>, vector<8x256xf32>, vector<8x256xf32> -> vector<72x256xf32>
    %cst_31 = arith.constant dense<0.000000e+00> : vector<8x256xf32>
    %72 = tpu.matmul %54, %71, %cst_31 {dimension_numbers = #tpu.dot_dimension_numbers<[1], [0], [0], [1], [0, 0, 1, 1], [], []>} : vector<8x72xf32>, vector<72x256xf32>, vector<8x256xf32> -> vector<8x256xf32>
    %c1_32 = arith.constant 1 : index
    %c0_33 = arith.constant 0 : index
    %c0_34 = arith.constant 0 : index
    %73 = vector.load %arg3[%c1_32, %c0_33, %c0_34] : memref<2x8x1xf32, #tpu.memory_space<vmem>>, vector<1x8x1xf32>
    %74 = vector.shape_cast %73 : vector<1x8x1xf32> to vector<8x1xf32>
    %75 = vector.broadcast %74 : vector<8x1xf32> to vector<8x256xf32>
    %76 = arith.addf %72, %75 : vector<8x256xf32>
    %77 = arith.addf %76, %1 : vector<8x256xf32>
    %cst_35 = arith.constant 0.000000e+00 : f32
    %78 = vector.broadcast %cst_35 : f32 to vector<8x256xf32>
    %79 = arith.maximumf %77, %78 : vector<8x256xf32>
    %c0_36 = arith.constant 0 : index
    %c0_37 = arith.constant 0 : index
    %c0_38 = arith.constant 0 : index
    %80 = vector.load %arg4[%c0_36, %c0_37, %c0_38] : memref<1x8x256xf32, #tpu.memory_space<vmem>>, vector<1x8x256xf32>
    %81 = vector.shape_cast %80 : vector<1x8x256xf32> to vector<8x256xf32>
    %82 = vector.shape_cast %79 : vector<8x256xf32> to vector<1x8x256xf32>
    tpu.vector_store %arg4[%c0_36, %c0_37, %c0_38], %82 {strides = array<i32>} : memref<1x8x256xf32, #tpu.memory_space<vmem>>, vector<1x8x256xf32>,
    return
  }
  func.func @transform_0(%arg0: i32) -> (i32, i32, i32) {
    %c0_i32 = arith.constant 0 : i32
    %c0_i32_0 = arith.constant 0 : i32
    %c0_i32_1 = arith.constant 0 : i32
    return %arg0, %c0_i32, %c0_i32_0 : i32, i32, i32
  }
  func.func @transform_1(%arg0: i32) -> (i32, i32, i32) {
    %c0_i32 = arith.constant 0 : i32
    %c0_i32_0 = arith.constant 0 : i32
    %c0_i32_1 = arith.constant 0 : i32
    %c0_i32_2 = arith.constant 0 : i32
    return %c0_i32, %c0_i32_0, %c0_i32_1 : i32, i32, i32
  }
  func.func @transform_2(%arg0: i32) -> (i32, i32, i32) {
    %c0_i32 = arith.constant 0 : i32
    %c0_i32_0 = arith.constant 0 : i32
    %c0_i32_1 = arith.constant 0 : i32
    %c0_i32_2 = arith.constant 0 : i32
    return %c0_i32, %c0_i32_0, %c0_i32_1 : i32, i32, i32
  }
  func.func @transform_3(%arg0: i32) -> (i32, i32, i32) {
    %c0_i32 = arith.constant 0 : i32
    %c0_i32_0 = arith.constant 0 : i32
    %c0_i32_1 = arith.constant 0 : i32
    return %arg0, %c0_i32, %c0_i32_0 : i32, i32, i32
  }
}

</mosaic_0001>

<llo_original>
// kernel: tpu_custom_call.1
$region0: #{tpu_custom_call.1}
  #allocation0 [shape = 'u32[]', space=smem, size = 0x4, offset = 0x4, fixed_abs, tag = 'smem constant byte address 0x4 - core index']
  #allocation1 [shape = 'u32[144,128]{1,0:T(1,128)}', space=vmem, size = 0x12000, scoped, tag = 'internal scratch']
  %s0 = inlined_call_operand.vmem [shape: f32[1,8,256], index: 0, kind: input, shape index: {}]
  %s1 = inlined_call_operand.hbm [shape: f32[2,8,72], index: 1, kind: input, shape index: {}]
  %s2 = inlined_call_operand.vmem [shape: f32[2,8,1], index: 2, kind: input, shape index: {}]
  %s3 = inlined_call_operand.hbm [shape: f32[1,8,256], index: 3, kind: output, shape index: {}]
  %s4 = sld [smem:[#allocation0]]
  $region26: #{tpu_custom_call.1} parent=0
    _
  %s6 = ssub.s32 1, %s4
  %s7 = scalar_select 0, %s6, %s4
  $region1: #{tpu_custom_call.1} parent=0
    #allocation2 [shape = 'u8[8192]{0}', space=vmem, size = 0x2000, scoped, tag = 'input window, operand 1, single buffered']
    #allocation3 [shape = 's32[1]{0}', space=sflag, size = 0x4, scoped, tag = 'scoped memory for tpu_custom_call.1']
    #allocation4 [shape = 's32[1]{0}', space=sflag, size = 0x4, scoped, tag = 'scoped memory for tpu_custom_call.1']
    #allocation5 [shape = 'u8[8192]{0}', space=vmem, size = 0x2000, scoped, tag = 'output window, operand 0, single buffered']
    %8 = vsyncpa [#allocation3], 0
    %9 = vsyncpa [#allocation4], 0
    // Predicated region
    $region2: #{tpu_custom_call.1} parent=1 // pred_check
      _
    $region3: #{tpu_custom_call.1} parent=1 // pred_check_branch
      %11 = sbr.rel (0) target = $region5
    $region4: #{tpu_custom_call.1} parent=1 // pred_region
      _
    $region5: #{tpu_custom_call.1} parent=1 // pred_fallthru
      _
    // Predicated region
    $region6: #{tpu_custom_call.1} parent=1 // pred_check
      _
    $region7: #{tpu_custom_call.1} parent=1 // pred_check_branch
      %13 = sbr.rel (0) target = $region9
    $region8: #{tpu_custom_call.1} parent=1 // pred_region
      %s15 = ssub.s32 256, 256
      %16 = vsyncadd [#allocation3], %s15
      %s17 = sshll.u32 [#allocation2], 4
      %s18 = int_to_ptr.vmem [resolvable:$true] %s17
      %23 = dma.hbm_to_vmem [thread:$0]  %s1, 256, %s18, [#allocation3], 128, 128, 8
    $region9: #{tpu_custom_call.1} parent=1 // pred_fallthru
      _
    // Predicated region
    $region10: #{tpu_custom_call.1} parent=1 // pred_check
      _
    $region11: #{tpu_custom_call.1} parent=1 // pred_check_branch
      %25 = sbr.rel (0) target = $region13
    $region12: #{tpu_custom_call.1} parent=1 // pred_region
      _
    $region13: #{tpu_custom_call.1} parent=1 // pred_fallthru
      _
    // Predicated region
    $region14: #{tpu_custom_call.1} parent=1 // pred_check
      _
    $region15: #{tpu_custom_call.1} parent=1 // pred_check_branch
      %27 = sbr.rel (0) target = $region17
    $region16: #{tpu_custom_call.1} parent=1 // pred_region
      %28 = dma.done [#allocation3], 256
    $region17: #{tpu_custom_call.1} parent=1 // pred_fallthru
      _
    %v29 = vld [vmem:[%s0] sm:$0xff]
    %v30 = vld [vmem:[%s0 + $0x8] sm:$0xff]
    %v31 = vlaneseq
    %v32 = vand.u32 %v31, 127
    %v33 = vadd.s32 %v32, 128
    %vm34 = vcmp.lt.s32.totalorder %v32, 0
    %v35 = vsub.s32 0, %v32
    %v36 = vsel %vm34, %v35, %v32
    %v37 = vshrl.u32 %v36, 4
    %v38 = vand.u32 %v36, 15
    %v39 = vsub.s32 0, %v38
    %v40 = vsel %vm34, %v39, %v38
    %vm41 = vcmp.lt.s32.totalorder %v33, 0
    %v42 = vsub.s32 0, %v33
    %v43 = vsel %vm41, %v42, %v33
    %v44 = vshrl.u32 %v43, 4
    %v45 = vand.u32 %v43, 15
    %v46 = vsub.s32 0, %v45
    %v47 = vsel %vm41, %v46, %v45
    %vm48 = vcmp.ne.s32.totalorder %v40, 0
    %vm49 = vcmp.ne.s32.totalorder %v47, 0
    %vm50 = vcmp.lt.s32.totalorder %v40, 0
    %vm51 = vcmp.lt.s32.totalorder %v47, 0
    %vm52 = vmand %vm50, %vm48
    %vm53 = vmand %vm51, %vm49
    %v54 = vadd.s32 %v40, 16
    %v55 = vadd.s32 %v47, 16
    %v56 = vsel %vm52, %v54, %v40
    %v57 = vsel %vm53, %v55, %v47
    %vm58 = vcmp.eq.s32.totalorder %v56, 0
    %vm59 = vcmp.eq.s32.totalorder %v57, 0
    %vm60 = vcmp.eq.s32.totalorder %v56, 15
    %vm61 = vcmp.eq.s32.totalorder %v57, 15
    %vm62 = vcmp.lt.s32.totalorder %v32, 16
    %vm63 = vcmp.lt.s32.totalorder %v33, 16
    %vm64 = vcmp.ge.s32.totalorder %v32, 240
    %vm65 = vcmp.ge.s32.totalorder %v33, 240
    %v66 = vld [vmem:[#allocation2] sm:$0xff]
    %67 = vrot.lane.b32.xlu0 %v29, 1
    %v68 = vpop.permute.xlu0 %67
    %69 = vrot.lane.b32.xlu0 %v30, 1
    %v70 = vpop.permute.xlu0 %69
    %vm71 = vcmp.lt.s32.totalorder %v32, 1
    %v72 = vsel %vm71, %v68, %v70
    %v73 = vsel %vm71, %v70, %v68
    %74 = vrot.lane.b32.xlu0 %v29, 127
    %v75 = vpop.permute.xlu0 %74
    %76 = vrot.lane.b32.xlu0 %v30, 127
    %v77 = vpop.permute.xlu0 %76
    %vm78 = vcmp.lt.s32.totalorder %v32, 127
    %v79 = vsel %vm78, %v75, %v77
    %v80 = vsel %vm78, %v77, %v75
    %v81 = vsel %vm58, %v79, %v73
    %v82 = vsel %vm59, %v80, %v72
    %v83 = vsel %vm60, %v73, %v79
    %v84 = vsel %vm61, %v72, %v80
    %85 = vrot.lane.b32.xlu0 %v81, 16
    %v86 = vpop.permute.xlu0 %85
    %87 = vrot.lane.b32.xlu0 %v82, 16
    %v88 = vpop.permute.xlu0 %87
    %v89 = vsel %vm62, %v86, %v88
    %v90 = vsel %vm62, %v88, %v86
    %91 = vrot.lane.b32.xlu0 %v81, 112
    %v92 = vpop.permute.xlu0 %91
    %93 = vrot.lane.b32.xlu0 %v82, 112
    %v94 = vpop.permute.xlu0 %93
    %vm95 = vcmp.lt.s32.totalorder %v32, 112
    %v96 = vsel %vm95, %v92, %v94
    %v97 = vsel %vm95, %v94, %v92
    %v98 = vsel %vm62, %v96, %v90
    %v99 = vsel %vm63, %v97, %v89
    %v100 = vsel %vm64, %v90, %v96
    %v101 = vsel %vm65, %v89, %v97
    %102 = vrot.lane.b32.xlu0 %v29, 16
    %v103 = vpop.permute.xlu0 %102
    %104 = vrot.lane.b32.xlu0 %v30, 16
    %v105 = vpop.permute.xlu0 %104
    %v106 = vsel %vm62, %v103, %v105
    %v107 = vsel %vm62, %v105, %v103
    %108 = vrot.lane.b32.xlu0 %v29, 112
    %v109 = vpop.permute.xlu0 %108
    %110 = vrot.lane.b32.xlu0 %v30, 112
    %v111 = vpop.permute.xlu0 %110
    %v112 = vsel %vm95, %v109, %v111
    %v113 = vsel %vm95, %v111, %v109
    %v114 = vsel %vm62, %v112, %v107
    %v115 = vsel %vm63, %v113, %v106
    %v116 = vsel %vm64, %v107, %v112
    %v117 = vsel %vm65, %v106, %v113
    %118 = vrot.lane.b32.xlu0 %v83, 16
    %v119 = vpop.permute.xlu0 %118
    %120 = vrot.lane.b32.xlu0 %v84, 16
    %v121 = vpop.permute.xlu0 %120
    %v122 = vsel %vm62, %v119, %v121
    %v123 = vsel %vm62, %v121, %v119
    %124 = vrot.lane.b32.xlu0 %v83, 112
    %v125 = vpop.permute.xlu0 %124
    %126 = vrot.lane.b32.xlu0 %v84, 112
    %v127 = vpop.permute.xlu0 %126
    %v128 = vsel %vm95, %v125, %v127
    %v129 = vsel %vm95, %v127, %v125
    %v130 = vsel %vm62, %v128, %v123
    %v131 = vsel %vm63, %v129, %v122
    %v132 = vsel %vm64, %v123, %v128
    %v133 = vsel %vm65, %v122, %v129
    %v134 = vld [vmem:[%s2] sm:$0xff]
    %136 = vset.pattern.permute.xlu0 0
    %137 = vperm.xlu0 %136, %v134
    %v138 = vpop.permute.xlu0 %137
    %vm140 = vcmask 588800
    %v142 = vsel %vm140, %v66, 0
    %144 = vmatprep.subr.mxu0 %v99
    %145 = vmatpush1.msra.mxu0 %v98
    %146 = vmatprep.subr.mxu0 %v115
    %147 = vmatpush1.msra.mxu0 %v114
    %148 = vmatprep.subr.mxu0 %v131
    %149 = vmatpush1.msra.mxu0 %v130
    %150 = vmatprep.subr.mxu0 %v82
    %151 = vmatpush1.msra.mxu0 %v81
    %152 = vmatprep.subr.mxu0 %v30
    %153 = vmatpush1.msra.mxu0 %v29
    %154 = vmatprep.subr.mxu0 %v84
    %155 = vmatpush1.msra.mxu0 %v83
    %156 = vmatprep.subr.mxu0 %v101
    %157 = vmatpush1.msra.mxu0 %v100
    %158 = vmatprep.subr.mxu0 %v117
    %159 = vmatpush1.msra.mxu0 %v116
    %160 = vmatprep.subr.mxu0 %v133
    %161 = vmatpush1.msra.mxu0 %v132
    %162 = vmatprep.subr.mxu0 0.0
    %163 = vmatpush1.msra.mxu0 0.0
    %164 = vmatprep.subr.mxu0 0.0
    %165 = vmatpush1.msra.mxu0 0.0
    %166 = vmatprep.subr.mxu0 0.0
    %167 = vmatpush1.msra.mxu0 0.0
    %168 = vmatprep.subr.mxu0 0.0
    %169 = vmatpush1.msra.mxu0 0.0
    %170 = vmatprep.subr.mxu0 0.0
    %171 = vmatpush1.msra.mxu0 0.0
    %172 = vmatprep.subr.mxu0 0.0
    %173 = vmatpush1.msra.mxu0 0.0
    %174 = vmatprep.subr.mxu0 0.0
    %175 = vmatpush1.msra.mxu0 0.0
    %176 = vmatprep.subr.mxu0 0.0
    %177 = vmatpush1.msra.mxu0 0.0
    %178 = vmatprep.subr.mxu0 0.0
    %179 = vmatpush1.msra.mxu0 0.0
    %180 = vmatprep.subr.mxu0 0.0
    %181 = vmatpush1.msra.mxu0 0.0
    %182 = vmatprep.subr.mxu0 0.0
    %183 = vmatpush1.msra.mxu0 0.0
    %184 = vmatprep.subr.mxu0 0.0
    %185 = vmatpush1.msra.mxu0 0.0
    %186 = vmatprep.subr.mxu0 0.0
    %187 = vmatpush1.msra.mxu0 0.0
    %188 = vmatprep.subr.mxu0 0.0
    %189 = vmatpush1.msra.mxu0 0.0
    %190 = vmatprep.subr.mxu0 0.0
    %191 = vmatpush1.msra.mxu0 0.0
    %192 = vmatprep.subr.mxu0 0.0
    %193 = vmatpush1.msra.mxu0 0.0
    %194 = vmatprep.subr.mxu0 0.0
    %195 = vmatpush1.msra.mxu0 0.0
    %196 = vmatprep.subr.mxu0 0.0
    %197 = vmatpush1.msra.mxu0 0.0
    %198 = vmatprep.subr.mxu0 0.0
    %199 = vmatpush1.msra.mxu0 0.0
    %200 = vmatprep.subr.mxu0 0.0
    %201 = vmatpush1.msra.mxu0 0.0
    %202 = vmatprep.subr.mxu0 0.0
    %203 = vmatpush1.msra.mxu0 0.0
    %204 = vmatprep.subr.mxu0 0.0
    %205 = vmatpush1.msra.mxu0 0.0
    %206 = vmatprep.subr.mxu0 0.0
    %207 = vmatpush1.msra.mxu0 0.0
    %208 = vmatprep.mubr.f32.mxu0 0.0
    %209 = vmatmul.mubr.f32.gmra.mrb[0].mxu0 %v142
    %v210 = vpop.f32.mrb[0].mxu0
    %v211 = vadd.f32 %v138, %v210
    %v212 = vpop.f32.mrb[0].mxu0
    %v213 = vadd.f32 %v138, %v212
    %214 = vdwg.mxu0
    %v215 = vmax.f32 %v211, 0.0
    %v216 = vmax.f32 %v213, 0.0
    %s217 = scalar_lea.vmem [#allocation2], 8
    %v218 = vld [vmem:[%s217] sm:$0xff]
    %219 = vrot.lane.b32.xlu0 %v215, 1
    %v220 = vpop.permute.xlu0 %219
    %221 = vrot.lane.b32.xlu0 %v216, 1
    %v222 = vpop.permute.xlu0 %221
    %v223 = vsel %vm71, %v220, %v222
    %v224 = vsel %vm71, %v222, %v220
    %225 = vrot.lane.b32.xlu0 %v215, 127
    %v226 = vpop.permute.xlu0 %225
    %227 = vrot.lane.b32.xlu0 %v216, 127
    %v228 = vpop.permute.xlu0 %227
    %v229 = vsel %vm78, %v226, %v228
    %v230 = vsel %vm78, %v228, %v226
    %v231 = vsel %vm58, %v229, %v224
    %v232 = vsel %vm59, %v230, %v223
    %v233 = vsel %vm60, %v224, %v229
    %v234 = vsel %vm61, %v223, %v230
    %235 = vrot.lane.b32.xlu0 %v231, 16
    %v236 = vpop.permute.xlu0 %235
    %237 = vrot.lane.b32.xlu0 %v232, 16
    %v238 = vpop.permute.xlu0 %237
    %v239 = vsel %vm62, %v236, %v238
    %v240 = vsel %vm62, %v238, %v236
    %241 = vrot.lane.b32.xlu0 %v231, 112
    %v242 = vpop.permute.xlu0 %241
    %243 = vrot.lane.b32.xlu0 %v232, 112
    %v244 = vpop.permute.xlu0 %243
    %v245 = vsel %vm95, %v242, %v244
    %v246 = vsel %vm95, %v244, %v242
    %v247 = vsel %vm62, %v245, %v240
    %v248 = vsel %vm63, %v246, %v239
    %v249 = vsel %vm64, %v240, %v245
    %v250 = vsel %vm65, %v239, %v246
    %251 = vrot.lane.b32.xlu0 %v215, 16
    %v252 = vpop.permute.xlu0 %251
    %253 = vrot.lane.b32.xlu0 %v216, 16
    %v254 = vpop.permute.xlu0 %253
    %v255 = vsel %vm62, %v252, %v254
    %v256 = vsel %vm62, %v254, %v252
    %257 = vrot.lane.b32.xlu0 %v215, 112
    %v258 = vpop.permute.xlu0 %257
    %259 = vrot.lane.b32.xlu0 %v216, 112
    %v260 = vpop.permute.xlu0 %259
    %v261 = vsel %vm95, %v258, %v260
    %v262 = vsel %vm95, %v260, %v258
    %v263 = vsel %vm62, %v261, %v256
    %v264 = vsel %vm63, %v262, %v255
    %v265 = vsel %vm64, %v256, %v261
    %v266 = vsel %vm65, %v255, %v262
    %267 = vrot.lane.b32.xlu0 %v233, 16
    %v268 = vpop.permute.xlu0 %267
    %269 = vrot.lane.b32.xlu0 %v234, 16
    %v270 = vpop.permute.xlu0 %269
    %v271 = vsel %vm62, %v268, %v270
    %v272 = vsel %vm62, %v270, %v268
    %273 = vrot.lane.b32.xlu0 %v233, 112
    %v274 = vpop.permute.xlu0 %273
    %275 = vrot.lane.b32.xlu0 %v234, 112
    %v276 = vpop.permute.xlu0 %275
    %v277 = vsel %vm95, %v274, %v276
    %v278 = vsel %vm95, %v276, %v274
    %v279 = vsel %vm62, %v277, %v272
    %v280 = vsel %vm63, %v278, %v271
    %v281 = vsel %vm64, %v272, %v277
    %v282 = vsel %vm65, %v271, %v278
    %s283 = scalar_lea.vmem %s2, 8
    %v284 = vld [vmem:[%s283] sm:$0xff]
    %286 = vset.pattern.permute.xlu0 0
    %287 = vperm.xlu0 %286, %v284
    %v288 = vpop.permute.xlu0 %287
    %v291 = vsel %vm140, %v218, 0
    %293 = vmatprep.subr.mxu0 %v248
    %294 = vmatpush1.msra.mxu0 %v247
    %295 = vmatprep.subr.mxu0 %v264
    %296 = vmatpush1.msra.mxu0 %v263
    %297 = vmatprep.subr.mxu0 %v280
    %298 = vmatpush1.msra.mxu0 %v279
    %299 = vmatprep.subr.mxu0 %v232
    %300 = vmatpush1.msra.mxu0 %v231
    %301 = vmatprep.subr.mxu0 %v216
    %302 = vmatpush1.msra.mxu0 %v215
    %303 = vmatprep.subr.mxu0 %v234
    %304 = vmatpush1.msra.mxu0 %v233
    %305 = vmatprep.subr.mxu0 %v250
    %306 = vmatpush1.msra.mxu0 %v249
    %307 = vmatprep.subr.mxu0 %v266
    %308 = vmatpush1.msra.mxu0 %v265
    %309 = vmatprep.subr.mxu0 %v282
    %310 = vmatpush1.msra.mxu0 %v281
    %311 = vmatprep.subr.mxu0 0.0
    %312 = vmatpush1.msra.mxu0 0.0
    %313 = vmatprep.subr.mxu0 0.0
    %314 = vmatpush1.msra.mxu0 0.0
    %315 = vmatprep.subr.mxu0 0.0
    %316 = vmatpush1.msra.mxu0 0.0
    %317 = vmatprep.subr.mxu0 0.0
    %318 = vmatpush1.msra.mxu0 0.0
    %319 = vmatprep.subr.mxu0 0.0
    %320 = vmatpush1.msra.mxu0 0.0
    %321 = vmatprep.subr.mxu0 0.0
    %322 = vmatpush1.msra.mxu0 0.0
    %323 = vmatprep.subr.mxu0 0.0
    %324 = vmatpush1.msra.mxu0 0.0
    %325 = vmatprep.subr.mxu0 0.0
    %326 = vmatpush1.msra.mxu0 0.0
    %327 = vmatprep.subr.mxu0 0.0
    %328 = vmatpush1.msra.mxu0 0.0
    %329 = vmatprep.subr.mxu0 0.0
    %330 = vmatpush1.msra.mxu0 0.0
    %331 = vmatprep.subr.mxu0 0.0
    %332 = vmatpush1.msra.mxu0 0.0
    %333 = vmatprep.subr.mxu0 0.0
    %334 = vmatpush1.msra.mxu0 0.0
    %335 = vmatprep.subr.mxu0 0.0
    %336 = vmatpush1.msra.mxu0 0.0
    %337 = vmatprep.subr.mxu0 0.0
    %338 = vmatpush1.msra.mxu0 0.0
    %339 = vmatprep.subr.mxu0 0.0
    %340 = vmatpush1.msra.mxu0 0.0
    %341 = vmatprep.subr.mxu0 0.0
    %342 = vmatpush1.msra.mxu0 0.0
    %343 = vmatprep.subr.mxu0 0.0
    %344 = vmatpush1.msra.mxu0 0.0
    %345 = vmatprep.subr.mxu0 0.0
    %346 = vmatpush1.msra.mxu0 0.0
    %347 = vmatprep.subr.mxu0 0.0
    %348 = vmatpush1.msra.mxu0 0.0
    %349 = vmatprep.subr.mxu0 0.0
    %350 = vmatpush1.msra.mxu0 0.0
    %351 = vmatprep.subr.mxu0 0.0
    %352 = vmatpush1.msra.mxu0 0.0
    %353 = vmatprep.subr.mxu0 0.0
    %354 = vmatpush1.msra.mxu0 0.0
    %355 = vmatprep.subr.mxu0 0.0
    %356 = vmatpush1.msra.mxu0 0.0
    %357 = vmatprep.mubr.f32.mxu0 0.0
    %358 = vmatmul.mubr.f32.gmra.mrb[0].mxu0 %v291
    %v359 = vpop.f32.mrb[0].mxu0
    %v360 = vadd.f32 %v288, %v359
    %v361 = vpop.f32.mrb[0].mxu0
    %v362 = vadd.f32 %v288, %v361
    %363 = vdwg.mxu0
    %v364 = vadd.f32 %v360, %v29
    %v365 = vadd.f32 %v362, %v30
    %v366 = vmax.f32 %v364, 0.0
    %v367 = vmax.f32 %v365, 0.0
    %368 = vst [vmem:[#allocation5] sm:$0xff] %v366
    %369 = vst [vmem:[#allocation5 + $0x8] sm:$0xff] %v367
    // Predicated region
    $region18: #{tpu_custom_call.1} parent=1 // pred_check
      _
    $region19: #{tpu_custom_call.1} parent=1 // pred_check_branch
      %371 = sbr.rel (0) target = $region21
    $region20: #{tpu_custom_call.1} parent=1 // pred_region
      %s373 = ssub.s32 256, 256
      %374 = vsyncadd [#allocation4], %s373
      %s376 = sshll.u32 [#allocation5], 4
      %s377 = int_to_ptr.vmem [resolvable:$true] %s376
      %379 = dma.vmem_to_hbm [thread:$0]  %s377, 256, %s3, [#allocation4]
    $region21: #{tpu_custom_call.1} parent=1 // pred_fallthru
      _
    // Predicated region
    $region22: #{tpu_custom_call.1} parent=1 // pred_check
      _
    $region23: #{tpu_custom_call.1} parent=1 // pred_check_branch
      %381 = sbr.rel (0) target = $region25
    $region24: #{tpu_custom_call.1} parent=1 // pred_region
      %382 = dma.done [#allocation4], 256
    $region25: #{tpu_custom_call.1} parent=1 // pred_fallthru
      _
    %383 = vsyncpa [#allocation3], 1
    %384 = vsyncpa [#allocation4], 1

</llo_original>
